<compile_context>
chip_gen: v7x
topology: tpu7x:2x2x1
jax: 0.10.0
libtpu: 0.0.40
codegen_flags: <defaults>
</compile_context>

<pallas_src>
import functools

import jax
import jax.numpy as jnp
from jax import lax
from jax.experimental import pallas as pl
from jax.experimental.pallas import tpu as pltpu

KH = KW = 5
PAD = 2
POOL = 2
BN_EPS = 1e-5


def _convblock_kernel(x_ref, w_ref, scale_ref, shift_ref, o_ref, *, Wp, C_out):
    # x_ref:  (1, TR, K_PAD) bf16 im2col rows ordered (h, col-parity, pw);
    #         TR = THp * 4 * Wp rows cover THp pooled output rows.
    # w_ref:  (K_PAD, C_out) bf16 conv weights, K index = kh*KW*C_in + kw*C_in + ci,
    #         zero-padded to K_PAD.
    # scale_ref / shift_ref: (1, C_out) f32 folded eval-BN affine * 0.25 (pool factor).
    # o_ref:  (1, THp, Wp, C_out) pooled output rows for this (batch, row-tile).
    rows = x_ref.shape[1]
    g = rows // (4 * Wp)                       # pooled output rows in this tile

    # Single lane-dense MXU dot: (TR, K_PAD) x (K_PAD, C_out), f32 accumulation.
    acc = jnp.dot(x_ref[0], w_ref[...], preferred_element_type=jnp.float32)

    # Eval-BN + ReLU; the 0.25 avg-pool factor is pre-folded into scale/shift.
    y = jnp.maximum(acc * scale_ref[...] + shift_ref[...], 0.0)     # (TR, C_out) f32

    # 2x2 average pool: rows are ordered (ph, row-parity, col-parity, pw), so the
    # four pooling partners are four leading-dim slices of a relabel reshape.
    y5 = y.reshape(g, 2, 2, Wp, C_out)
    pooled = (y5[:, 0, 0] + y5[:, 0, 1]) + (y5[:, 1, 0] + y5[:, 1, 1])

    # TODO(synk): a lane-dense (THp, Wp*C_out) store would need a minor-dim-changing
    # relayout in-kernel; kept as (THp, Wp, C_out) to stay on proven lowering paths.
    o_ref[0] = pooled.astype(o_ref.dtype)


def _rows_per_tile(Hp, Wp, max_rows=2048):
    """Pooled output rows per grid step: largest divisor of Hp whose im2col row
    block (thp * 4 * Wp rows, K_PAD lanes, bf16) stays under max_rows (~0.5 MiB)."""
    best = 1
    for thp in range(1, Hp + 1):
        if Hp % thp == 0 and thp * 4 * Wp <= max_rows:
            best = thp
    return best


def conv_block_5x5(x_nchw, w_oihw, bn_gamma, bn_beta, bn_mean, bn_var):
    """Forward pass of ConvBlock5x5 (pool_type='avg'). Input/output are NCHW."""
    N, C_in, H, W = x_nchw.shape
    C_out = w_oihw.shape[0]
    assert H % POOL == 0 and W % POOL == 0, "2x2 avg pool expects even H, W"
    Hp, Wp = H // POOL, W // POOL
    KWC = KW * C_in
    K_RAW = KH * KWC
    K_PAD = ((K_RAW + 127) // 128) * 128

    # ---- wrapper-side layout glue (plain XLA ops) ----
    # bf16 activations for the MXU (accumulation stays f32 in-kernel).
    x = jnp.transpose(x_nchw, (0, 2, 3, 1)).astype(jnp.bfloat16)      # NHWC
    x_pad = jnp.pad(x, ((0, 0), (PAD, PAD), (PAD, PAD), (0, 0)))
    # Fold kw then kh into the channel axis -> full im2col with K order (kh, kw, ci):
    #   x_khkw[n, h, w, kh*KWC + kw*C_in + ci] = x_pad[n, h+kh, w+kw, ci]
    # TODO(synk): this duplicates the input ~KH*KW x in HBM; if HBM-bound (v5e),
    # stream the kw-folded image once and build the im2col in a VMEM scratch
    # in-kernel instead (trades in-kernel copy work for bytes).
    x_kw = jnp.concatenate([x_pad[:, :, kw:kw + W, :] for kw in range(KW)], axis=-1)
    x_khkw = jnp.concatenate([x_kw[:, kh:kh + H, :, :] for kh in range(KH)], axis=-1)
    # Interleave the 2x2 pooling partners into the row order (h, col-parity, pw)
    # and zero-pad K to a lane-dense multiple of 128.
    x_im = jnp.stack([x_khkw[:, :, 0::2, :], x_khkw[:, :, 1::2, :]], axis=2)
    x_im = x_im.reshape(N, H * 2 * Wp, K_RAW)
    x_im = jnp.pad(x_im, ((0, 0), (0, 0), (0, K_PAD - K_RAW)))

    # Conv weights (C_out, C_in, KH, KW) -> (K_RAW, C_out) in matching K order,
    # zero-padded rows, bf16 for the MXU.
    w2 = jnp.transpose(w_oihw, (2, 3, 1, 0)).reshape(K_RAW, C_out)
    w2 = jnp.pad(w2, ((0, K_PAD - K_RAW), (0, 0))).astype(jnp.bfloat16)

    # Eval-mode BN folded to an affine; fold in the 2x2 avg-pool 1/4
    # (ReLU commutes with a positive scale).
    scale = (bn_gamma / jnp.sqrt(bn_var + BN_EPS)).astype(jnp.float32)
    shift = bn_beta.astype(jnp.float32) - bn_mean.astype(jnp.float32) * scale
    scale = (scale * 0.25).reshape(1, C_out)
    shift = (shift * 0.25).reshape(1, C_out)

    THp = _rows_per_tile(Hp, Wp)
    TR = THp * 4 * Wp
    n_row_tiles = Hp // THp

    kernel = functools.partial(_convblock_kernel, Wp=Wp, C_out=C_out)

    flops = 2 * N * H * W * KH * KW * C_in * C_out
    bytes_accessed = (N * H * 2 * Wp * K_PAD * 2        # im2col stream (bf16)
                      + K_PAD * C_out * 2                # weights (bf16)
                      + N * Hp * Wp * C_out * 4)         # pooled output (f32)

    out_nhwc = pl.pallas_call(
        kernel,
        out_shape=jax.ShapeDtypeStruct((N, Hp, Wp, C_out), jnp.float32),
        grid_spec=pltpu.PrefetchScalarGridSpec(
            num_scalar_prefetch=0,
            grid=(N, n_row_tiles),
            in_specs=[
                pl.BlockSpec((1, TR, K_PAD), lambda n, t: (n, t, 0)),
                pl.BlockSpec((K_PAD, C_out), lambda n, t: (0, 0)),
                pl.BlockSpec((1, C_out), lambda n, t: (0, 0)),
                pl.BlockSpec((1, C_out), lambda n, t: (0, 0)),
            ],
            out_specs=pl.BlockSpec((1, THp, Wp, C_out), lambda n, t: (n, t, 0, 0)),
        ),
        compiler_params=pltpu.CompilerParams(
            dimension_semantics=("parallel", "parallel"),
            vmem_limit_bytes=32 * 1024 * 1024,
        ),
        cost_estimate=pl.CostEstimate(flops=flops, transcendentals=0,
                                      bytes_accessed=bytes_accessed),
    )(x_im, w2, scale, shift)

    return jnp.transpose(out_nhwc, (0, 3, 1, 2))   # back to NCHW


def _reference(x_nchw, w_oihw, bn_gamma, bn_beta, bn_mean, bn_var):
    y = lax.conv_general_dilated(
        x_nchw, w_oihw, window_strides=(1, 1),
        padding=((PAD, PAD), (PAD, PAD)),
        dimension_numbers=("NCHW", "OIHW", "NCHW"))
    scale = bn_gamma / jnp.sqrt(bn_var + BN_EPS)
    shift = bn_beta - bn_mean * scale
    y = y * scale[None, :, None, None] + shift[None, :, None, None]
    y = jnp.maximum(y, 0.0)
    N, C, H, W = y.shape
    y = y.reshape(N, C, H // POOL, POOL, W // POOL, POOL).mean(axis=(3, 5))
    return y


if __name__ == "__main__":
    N, C_in, C_out, H, W = 2, 4, 8, 16, 16

    key = jax.random.PRNGKey(0)
    kx, kw = jax.random.split(key)

    # input
    x = jax.random.normal(kx, (N, C_in, H, W), dtype=jnp.float32)

    # conv1: xavier_uniform_, bias=None
    fan_in = C_in * KH * KW
    fan_out = C_out * KH * KW
    bound = (6.0 / (fan_in + fan_out)) ** 0.5
    w = jax.random.uniform(kw, (C_out, C_in, KH, KW),
                           minval=-bound, maxval=bound, dtype=jnp.float32)

    # bn1: init_bn -> weight=1, bias=0; fresh running stats mean=0, var=1
    gamma = jnp.ones((C_out,), jnp.float32)
    beta = jnp.zeros((C_out,), jnp.float32)
    r_mean = jnp.zeros((C_out,), jnp.float32)
    r_var = jnp.ones((C_out,), jnp.float32)

    out = conv_block_5x5(x, w, gamma, beta, r_mean, r_var)
    out = jax.block_until_ready(out)

    ref = _reference(x, w, gamma, beta, r_mean, r_var)
    assert out.shape == (N, C_out, H // POOL, W // POOL), out.shape
    # bf16 MXU operands (f32 accumulation): bf16-appropriate tolerance vs exact f32 ref.
    assert jnp.allclose(out, ref, rtol=1e-2, atol=1e-2), \
        float(jnp.max(jnp.abs(out - ref)))

    print("KERNEL_OK")
</pallas_src>

<mosaic_0001>
module attributes {stable_mosaic.version = 11 : i64} {
  func.func @_convblock_kernel(%arg0: i32, %arg1: i32, %arg2: memref<1x256x128xbf16, #tpu.memory_space<vmem>>, %arg3: memref<128x8xbf16, #tpu.memory_space<vmem>>, %arg4: memref<1x8xf32, #tpu.memory_space<vmem>>, %arg5: memref<1x8xf32, #tpu.memory_space<vmem>>, %arg6: memref<1x8x8x8xf32, #tpu.memory_space<vmem>>) attributes {dimension_semantics = [#tpu.dimension_semantics<parallel>, #tpu.dimension_semantics<parallel>], iteration_bounds = array<i64: 2, 1>, scalar_prefetch = 0 : i64, scratch_operands = 0 : i64, tpu.core_type = #tpu.core_type<tc>, window_params = [{transform_indices = @transform_0, window_bounds = array<i64: 1, 256, 128>}, {pipeline_mode = #tpu.pipeline_mode<synchronous>, transform_indices = @transform_1, window_bounds = array<i64: 128, 8>}, {pipeline_mode = #tpu.pipeline_mode<synchronous>, transform_indices = @transform_2, window_bounds = array<i64: 1, 8>}, {pipeline_mode = #tpu.pipeline_mode<synchronous>, transform_indices = @transform_3, window_bounds = array<i64: 1, 8>}, {transform_indices = @transform_4, window_bounds = array<i64: 1, 8, 8, 8>}]} {
    %c0 = arith.constant 0 : index
    %c0_0 = arith.constant 0 : index
    %c0_1 = arith.constant 0 : index
    %0 = vector.load %arg2[%c0, %c0_0, %c0_1] : memref<1x256x128xbf16, #tpu.memory_space<vmem>>, vector<1x256x128xbf16>
    %1 = vector.shape_cast %0 : vector<1x256x128xbf16> to vector<256x128xbf16>
    %c0_2 = arith.constant 0 : index
    %c0_3 = arith.constant 0 : index
    %2 = vector.load %arg3[%c0_2, %c0_3] : memref<128x8xbf16, #tpu.memory_space<vmem>>, vector<128x8xbf16>
    %cst = arith.constant dense<0.000000e+00> : vector<256x8xf32>
    %3 = tpu.matmul %1, %2, %cst {dimension_numbers = #tpu.dot_dimension_numbers<[1], [0], [0], [1], [0, 0, 1, 1], [], []>} : vector<256x128xbf16>, vector<128x8xbf16>, vector<256x8xf32> -> vector<256x8xf32>
    %c0_4 = arith.constant 0 : index
    %c0_5 = arith.constant 0 : index
    %4 = vector.load %arg4[%c0_4, %c0_5] : memref<1x8xf32, #tpu.memory_space<vmem>>, vector<1x8xf32>
    %5 = vector.broadcast %4 : vector<1x8xf32> to vector<256x8xf32>
    %6 = arith.mulf %3, %5 : vector<256x8xf32>
    %c0_6 = arith.constant 0 : index
    %c0_7 = arith.constant 0 : index
    %7 = vector.load %arg5[%c0_6, %c0_7] : memref<1x8xf32, #tpu.memory_space<vmem>>, vector<1x8xf32>
    %8 = vector.broadcast %7 : vector<1x8xf32> to vector<256x8xf32>
    %9 = arith.addf %6, %8 : vector<256x8xf32>
    %cst_8 = arith.constant 0.000000e+00 : f32
    %10 = vector.broadcast %cst_8 : f32 to vector<256x8xf32>
    %11 = arith.maximumf %9, %10 : vector<256x8xf32>
    %12 = vector.shape_cast %11 : vector<256x8xf32> to vector<8x2x2x8x8xf32>
    %13 = vector.extract_strided_slice %12 {offsets = [0, 0, 0, 0, 0], sizes = [8, 1, 1, 8, 8], strides = [1, 1, 1, 1, 1]} : vector<8x2x2x8x8xf32> to vector<8x1x1x8x8xf32>
    %14 = vector.shape_cast %13 : vector<8x1x1x8x8xf32> to vector<8x8x8xf32>
    %15 = vector.extract_strided_slice %12 {offsets = [0, 0, 1, 0, 0], sizes = [8, 1, 1, 8, 8], strides = [1, 1, 1, 1, 1]} : vector<8x2x2x8x8xf32> to vector<8x1x1x8x8xf32>
    %16 = vector.shape_cast %15 : vector<8x1x1x8x8xf32> to vector<8x8x8xf32>
    %17 = arith.addf %14, %16 : vector<8x8x8xf32>
    %18 = vector.extract_strided_slice %12 {offsets = [0, 1, 0, 0, 0], sizes = [8, 1, 1, 8, 8], strides = [1, 1, 1, 1, 1]} : vector<8x2x2x8x8xf32> to vector<8x1x1x8x8xf32>
    %19 = vector.shape_cast %18 : vector<8x1x1x8x8xf32> to vector<8x8x8xf32>
    %20 = vector.extract_strided_slice %12 {offsets = [0, 1, 1, 0, 0], sizes = [8, 1, 1, 8, 8], strides = [1, 1, 1, 1, 1]} : vector<8x2x2x8x8xf32> to vector<8x1x1x8x8xf32>
    %21 = vector.shape_cast %20 : vector<8x1x1x8x8xf32> to vector<8x8x8xf32>
    %22 = arith.addf %19, %21 : vector<8x8x8xf32>
    %23 = arith.addf %17, %22 : vector<8x8x8xf32>
    %c0_9 = arith.constant 0 : index
    %c0_10 = arith.constant 0 : index
    %c0_11 = arith.constant 0 : index
    %c0_12 = arith.constant 0 : index
    %24 = vector.load %arg6[%c0_9, %c0_10, %c0_11, %c0_12] : memref<1x8x8x8xf32, #tpu.memory_space<vmem>>, vector<1x8x8x8xf32>
    %25 = vector.shape_cast %24 : vector<1x8x8x8xf32> to vector<8x8x8xf32>
    %26 = vector.shape_cast %23 : vector<8x8x8xf32> to vector<1x8x8x8xf32>
    tpu.vector_store %arg6[%c0_9, %c0_10, %c0_11, %c0_12], %26 {strides = array<i32>} : memref<1x8x8x8xf32, #tpu.memory_space<vmem>>, vector<1x8x8x8xf32>,
    return
  }
  func.func @transform_0(%arg0: i32, %arg1: i32) -> (i32, i32, i32) {
    %c0_i32 = arith.constant 0 : i32
    %c0_i32_0 = arith.constant 0 : i32
    return %arg0, %arg1, %c0_i32 : i32, i32, i32
  }
  func.func @transform_1(%arg0: i32, %arg1: i32) -> (i32, i32) {
    %c0_i32 = arith.constant 0 : i32
    %c0_i32_0 = arith.constant 0 : i32
    %c0_i32_1 = arith.constant 0 : i32
    return %c0_i32, %c0_i32_0 : i32, i32
  }
  func.func @transform_2(%arg0: i32, %arg1: i32) -> (i32, i32) {
    %c0_i32 = arith.constant 0 : i32
    %c0_i32_0 = arith.constant 0 : i32
    %c0_i32_1 = arith.constant 0 : i32
    return %c0_i32, %c0_i32_0 : i32, i32
  }
  func.func @transform_3(%arg0: i32, %arg1: i32) -> (i32, i32) {
    %c0_i32 = arith.constant 0 : i32
    %c0_i32_0 = arith.constant 0 : i32
    %c0_i32_1 = arith.constant 0 : i32
    return %c0_i32, %c0_i32_0 : i32, i32
  }
  func.func @transform_4(%arg0: i32, %arg1: i32) -> (i32, i32, i32, i32) {
    %c0_i32 = arith.constant 0 : i32
    %c0_i32_0 = arith.constant 0 : i32
    %c0_i32_1 = arith.constant 0 : i32
    return %arg0, %arg1, %c0_i32, %c0_i32_0 : i32, i32, i32, i32
  }
}

</mosaic_0001>

<llo_original>
// kernel: tpu_custom_call.1
$region0: #{tpu_custom_call.1}
  #allocation0 [shape = 'u32[]', space=smem, size = 0x4, offset = 0x4, fixed_abs, tag = 'smem constant byte address 0x4 - core index']
  #allocation1 [shape = 'u32[144,128]{1,0:T(1,128)}', space=vmem, size = 0x12000, scoped, tag = 'internal scratch']
  %s0 = inlined_call_operand.hbm [shape: bf16[2,256,128], index: 0, kind: input, shape index: {}]
  %s1 = inlined_call_operand.vmem [shape: bf16[128,8], index: 1, kind: input, shape index: {}]
  %s2 = inlined_call_operand.vmem [shape: f32[1,8], index: 2, kind: input, shape index: {}]
  %s3 = inlined_call_operand.vmem [shape: f32[1,8], index: 3, kind: input, shape index: {}]
  %s4 = inlined_call_operand.hbm [shape: f32[2,8,8,8], index: 4, kind: output, shape index: {}]
  %s5 = sld [smem:[#allocation0]]
  $region53: #{tpu_custom_call.1} parent=0
    _
  %s7 = ssub.s32 1, %s5
  %s8 = scalar_select 0, %s7, %s5
  $region1: #{tpu_custom_call.1} parent=0
    #allocation2 [shape = 'u8[131072]{0}', space=vmem, size = 0x20000, scoped, tag = 'input window, operand 0']
    #allocation3 [shape = 's32[2]{0}', space=sflag, size = 0x8, scoped, tag = 'scoped memory for tpu_custom_call.1']
    #allocation4 [shape = 's32[2]{0}', space=sflag, size = 0x8, scoped, tag = 'scoped memory for tpu_custom_call.1']
    #allocation5 [shape = 'u8[65536]{0}', space=vmem, size = 0x10000, scoped, tag = 'output window, operand 0']
    %9 = vsyncpa [#allocation3], 0
    %s10 = scalar_lea.sflag [#allocation3], 1
    %11 = vsyncpa %s10, 0
    %12 = vsyncpa [#allocation4], 0
    %s13 = scalar_lea.sflag [#allocation4], 1
    %14 = vsyncpa %s13, 0
    loop: start=0, step=1, limit=4
    $region2: #{tpu_custom_call.1} parent=1 // loop_pre_header
      _
    $region3: #{tpu_custom_call.1} parent=1 // loop_header
      %s16 = sphi 0, %s20
      %p17 = scmp.ge.s32.totalorder %s16, 4
      %s23 = sphi 0, %s35
      %s24 = sphi 0, %s31
      %s25 = sphi 0, %s23
      %s26 = sphi 0, %s24
      %s27 = sphi 0, %s25
      %s28 = sphi 0, %s26
      %s40 = sphi 0, %s42
      %s43 = sphi 0, %s40
      %s44 = sphi 0, %s43
      %s60 = sphi 0, %s44
      %s64 = sphi 0, %s64
      %s66 = sphi 0, %s64
      %s67 = sphi 0, %s66
      %s81 = sphi 0, %s67
      %s85 = sphi 0, %s85
      %s87 = sphi 0, %s85
      %s88 = sphi 0, %s87
      %s102 = sphi 0, %s88
      %s106 = sphi 0, %s106
      %s108 = sphi 0, %s106
      %s109 = sphi 0, %s108
      %s123 = sphi 0, %s109
      %s131 = sphi 0, %s133
      %s134 = sphi 0, %s131
      %s135 = sphi 0, %s134
      %s151 = sphi 0, %s135
    $region4: #{tpu_custom_call.1} parent=1 // loop_header_branch
      %19 = sbr.rel (%p17) target = $region8
    $region5: #{tpu_custom_call.1} parent=1 // loop_body
      %s21 = ssub.s32 %s16, 1
      %s22 = ssub.s32 %s16, 2
      %s29 = sadd.s32 1, %s24
      %p30 = scmp.ge.s32.totalorder %s29, 1
      %s31 = scalar_select %p30, 0, %s29
      %s32 = sadd.s32 1, %s23
      %s33 = scalar_select %p30, %s32, %s23
      %p34 = scmp.ge.s32.totalorder %s33, 2
      %s35 = scalar_select %p34, 0, %s33
      %s36 = ssub.s32 %s23, %s35
      %s37 = ssub.s32 %s24, %s31
      %s38 = sor.u32 %s36, %s37
      %p39 = scmp.eq.s32.totalorder %s38, 0
      %s41 = sadd.s32 %s40, 1
      %s42 = scalar_select %p39, %s40, %s41
      %p45 = pneg %p39
      %p46 = scmp.eq.s32.totalorder %s16, 1
      %p47 = por %p45, %p46
      %p48 = scmp.ne.s32.totalorder %s40, %s43
      %p49 = scmp.eq.s32.totalorder %s16, 0
      %p50 = por %p48, %p49
      %p51 = scmp.ne.s32.totalorder %s40, %s43
      %p52 = scmp.eq.s32.totalorder %s21, 1
      %p53 = por %p51, %p52
      %p54 = scmp.ne.s32.totalorder %s43, %s44
      %p55 = scmp.eq.s32.totalorder %s21, 0
      %p56 = por %p54, %p55
      %p57 = scmp.ne.s32.totalorder %s43, %s44
      %p58 = scmp.eq.s32.totalorder %s22, 1
      %p59 = por %p57, %p58
      %p61 = scmp.ne.s32.totalorder %s44, %s60
      %p62 = scmp.eq.s32.totalorder %s22, 0
      %p63 = por %p61, %p62
      %s65 = sadd.s32 %s64, 1
      %p68 = scmp.eq.s32.totalorder %s16, 1
      %p69 = scmp.ne.s32.totalorder %s64, %s66
      %p70 = scmp.eq.s32.totalorder %s16, 0
      %p71 = por %p69, %p70
      %p72 = scmp.ne.s32.totalorder %s64, %s66
      %p73 = scmp.eq.s32.totalorder %s21, 1
      %p74 = por %p72, %p73
      %p75 = scmp.ne.s32.totalorder %s66, %s67
      %p76 = scmp.eq.s32.totalorder %s21, 0
      %p77 = por %p75, %p76
      %p78 = scmp.ne.s32.totalorder %s66, %s67
      %p79 = scmp.eq.s32.totalorder %s22, 1
      %p80 = por %p78, %p79
      %p82 = scmp.ne.s32.totalorder %s67, %s81
      %p83 = scmp.eq.s32.totalorder %s22, 0
      %p84 = por %p82, %p83
      %s86 = sadd.s32 %s85, 1
      %p89 = scmp.eq.s32.totalorder %s16, 1
      %p90 = scmp.ne.s32.totalorder %s85, %s87
      %p91 = scmp.eq.s32.totalorder %s16, 0
      %p92 = por %p90, %p91
      %p93 = scmp.ne.s32.totalorder %s85, %s87
      %p94 = scmp.eq.s32.totalorder %s21, 1
      %p95 = por %p93, %p94
      %p96 = scmp.ne.s32.totalorder %s87, %s88
      %p97 = scmp.eq.s32.totalorder %s21, 0
      %p98 = por %p96, %p97
      %p99 = scmp.ne.s32.totalorder %s87, %s88
      %p100 = scmp.eq.s32.totalorder %s22, 1
      %p101 = por %p99, %p100
      %p103 = scmp.ne.s32.totalorder %s88, %s102
      %p104 = scmp.eq.s32.totalorder %s22, 0
      %p105 = por %p103, %p104
      %s107 = sadd.s32 %s106, 1
      %p110 = scmp.eq.s32.totalorder %s16, 1
      %p111 = scmp.ne.s32.totalorder %s106, %s108
      %p112 = scmp.eq.s32.totalorder %s16, 0
      %p113 = por %p111, %p112
      %p114 = scmp.ne.s32.totalorder %s106, %s108
      %p115 = scmp.eq.s32.totalorder %s21, 1
      %p116 = por %p114, %p115
      %p117 = scmp.ne.s32.totalorder %s108, %s109
      %p118 = scmp.eq.s32.totalorder %s21, 0
      %p119 = por %p117, %p118
      %p120 = scmp.ne.s32.totalorder %s108, %s109
      %p121 = scmp.eq.s32.totalorder %s22, 1
      %p122 = por %p120, %p121
      %p124 = scmp.ne.s32.totalorder %s109, %s123
      %p125 = scmp.eq.s32.totalorder %s22, 0
      %p126 = por %p124, %p125
      %s127 = ssub.s32 %s23, %s35
      %s128 = ssub.s32 %s24, %s31
      %s129 = sor.u32 %s127, %s128
      %p130 = scmp.eq.s32.totalorder %s129, 0
      %s132 = sadd.s32 %s131, 1
      %s133 = scalar_select %p130, %s131, %s132
      %p136 = pneg %p130
      %p137 = scmp.eq.s32.totalorder %s16, 1
      %p138 = por %p136, %p137
      %p139 = scmp.ne.s32.totalorder %s131, %s134
      %p140 = scmp.eq.s32.totalorder %s16, 0
      %p141 = por %p139, %p140
      %p142 = scmp.ne.s32.totalorder %s131, %s134
      %p143 = scmp.eq.s32.totalorder %s21, 1
      %p144 = por %p142, %p143
      %p145 = scmp.ne.s32.totalorder %s134, %s135
      %p146 = scmp.eq.s32.totalorder %s21, 0
      %p147 = por %p145, %p146
      %p148 = scmp.ne.s32.totalorder %s134, %s135
      %p149 = scmp.eq.s32.totalorder %s22, 1
      %p150 = por %p148, %p149
      %p152 = scmp.ne.s32.totalorder %s135, %s151
      %p153 = scmp.eq.s32.totalorder %s22, 0
      %p154 = por %p152, %p153
      %p155 = scmp.le.s32.totalorder 1, %s16
      %p156 = scmp.lt.s32.totalorder %s16, 3
      %p157 = pnand %p155, %p156
      %p158 = pneg %p157
      // Predicated region
      $region9: #{tpu_custom_call.1} parent=5 // pred_check
        _
      $region10: #{tpu_custom_call.1} parent=5 // pred_check_branch
        %160 = sbr.rel (%p157) target = $region12
      $region11: #{tpu_custom_call.1} parent=5 // pred_region
        %s161 = ssub.s32 %s16, 1
        // Predicated region
        $region13: #{tpu_custom_call.1} parent=11 // pred_check
          %p162 = pneg %p77
        $region14: #{tpu_custom_call.1} parent=11 // pred_check_branch
          %164 = sbr.rel (%p162) target = $region16
        $region15: #{tpu_custom_call.1} parent=11 // pred_region
          _
        $region16: #{tpu_custom_call.1} parent=11 // pred_fallthru
          _
        // Predicated region
        $region17: #{tpu_custom_call.1} parent=11 // pred_check
          %p165 = pneg %p98
        $region18: #{tpu_custom_call.1} parent=11 // pred_check_branch
          %167 = sbr.rel (%p165) target = $region20
        $region19: #{tpu_custom_call.1} parent=11 // pred_region
          _
        $region20: #{tpu_custom_call.1} parent=11 // pred_fallthru
          _
        // Predicated region
        $region21: #{tpu_custom_call.1} parent=11 // pred_check
          %p168 = pneg %p119
        $region22: #{tpu_custom_call.1} parent=11 // pred_check_branch
          %170 = sbr.rel (%p168) target = $region24
        $region23: #{tpu_custom_call.1} parent=11 // pred_region
          _
        $region24: #{tpu_custom_call.1} parent=11 // pred_fallthru
          _
      $region12: #{tpu_custom_call.1} parent=5 // pred_fallthru
        _
      %p171 = scmp.lt.s32.totalorder %s16, 2
      // Predicated region
      $region25: #{tpu_custom_call.1} parent=5 // pred_check
        %p172 = pneg %p171
      $region26: #{tpu_custom_call.1} parent=5 // pred_check_branch
        %174 = sbr.rel (%p172) target = $region28
      $region27: #{tpu_custom_call.1} parent=5 // pred_region
        // Predicated region
        $region29: #{tpu_custom_call.1} parent=27 // pred_check
          %p175 = pneg %p50
        $region30: #{tpu_custom_call.1} parent=27 // pred_check_branch
          %177 = sbr.rel (%p175) target = $region32
        $region31: #{tpu_custom_call.1} parent=27 // pred_region
          %s178 = sand.u32 %s40, 1
          %s179 = scalar_lea.sflag [#allocation3], %s178
          %s180 = sand.u32 %s40, 1
          %s181 = smul.addr %s180, 128
          %s182 = scalar_lea.vmem [#allocation2], %s181
          %s183 = smul.u32 32, %s24
          %s185 = ssub.s32 2048, 2048
          %186 = vsyncadd %s179, %s185
          %s187 = smul.addr %s23, 32
          %s188 = sadd.s32 %s183, %s187
          %s189 = smul.addr %s188, 64
          %s190 = scalar_lea.hbm %s0, %s189
          %s191 = sshll.u32 %s182, 4
          %s192 = int_to_ptr.vmem [resolvable:$true] %s191
          %197 = dma.hbm_to_vmem [thread:$0]  %s190, 2048, %s192, %s179, 64, 64, 4
        $region32: #{tpu_custom_call.1} parent=27 // pred_fallthru
          _
      $region28: #{tpu_custom_call.1} parent=5 // pred_fallthru
        _
      %p198 = scmp.le.s32.totalorder 1, %s16
      %p199 = scmp.lt.s32.totalorder %s16, 3
      %p200 = pnand %p198, %p199
      %p201 = pneg %p200
      // Predicated region
      $region33: #{tpu_custom_call.1} parent=5 // pred_check
        _
      $region34: #{tpu_custom_call.1} parent=5 // pred_check_branch
        %203 = sbr.rel (%p200) target = $region36
      $region35: #{tpu_custom_call.1} parent=5 // pred_region
        %s204 = ssub.s32 %s16, 1
        %s205 = sand.u32 %s43, 1
        %s206 = scalar_lea.sflag [#allocation3], %s205
        %s207 = sand.u32 %s43, 1
        %s208 = smul.addr %s207, 128
        %s209 = scalar_lea.vmem [#allocation2], %s208
        // Predicated region
        $region37: #{tpu_custom_call.1} parent=35 // pred_check
          %p210 = pneg %p56
        $region38: #{tpu_custom_call.1} parent=35 // pred_check_branch
          %212 = sbr.rel (%p210) target = $region40
        $region39: #{tpu_custom_call.1} parent=35 // pred_region
          %213 = dma.done %s206, 2048
        $region40: #{tpu_custom_call.1} parent=35 // pred_fallthru
          _
        %s214 = sand.u32 %s43, 1
        %s215 = scalar_lea.sflag [#allocation3], %s214
        %s216 = sand.u32 %s43, 1
        %s217 = smul.addr %s216, 128
        %s218 = scalar_lea.vmem [#allocation2], %s217
        %p219 = pneg %p56
        %p220 = pneg %p53
        %p221 = pneg %p77
        %p222 = pneg %p74
        %p223 = pneg %p98
        %p224 = pneg %p95
        %p225 = pneg %p119
        %p226 = pneg %p116
        %p227 = pneg %p147
        %p228 = pneg %p144
        %s229 = sand.u32 %s134, 1
        %s230 = scalar_lea.sflag [#allocation4], %s229
        %s231 = sand.u32 %s134, 1
        %s232 = smul.addr %s231, 64
        %s233 = scalar_lea.vmem [#allocation5], %s232
        %s234 = smul.u32 32, %s26
        %s235 = smul.u32 8, %s26
        %v237 = vld [vmem:[%s209] sm:$0xf]
        %v238 = vld [vmem:[%s209 + $0x4] sm:$0xf]
        %v239 = vld [vmem:[%s209 + $0x8] sm:$0xf]
        %v240 = vld [vmem:[%s209 + $0xc] sm:$0xf]
        %v241 = vld [vmem:[%s209 + $0x10] sm:$0xf]
        %v242 = vld [vmem:[%s209 + $0x14] sm:$0xf]
        %v243 = vld [vmem:[%s209 + $0x18] sm:$0xf]
        %v244 = vld [vmem:[%s209 + $0x1c] sm:$0xf]
        %v245 = vld [vmem:[%s209 + $0x20] sm:$0xf]
        %v246 = vld [vmem:[%s209 + $0x24] sm:$0xf]
        %v247 = vld [vmem:[%s209 + $0x28] sm:$0xf]
        %v248 = vld [vmem:[%s209 + $0x2c] sm:$0xf]
        %v249 = vld [vmem:[%s209 + $0x30] sm:$0xf]
        %v250 = vld [vmem:[%s209 + $0x34] sm:$0xf]
        %v251 = vld [vmem:[%s209 + $0x38] sm:$0xf]
        %v252 = vld [vmem:[%s209 + $0x3c] sm:$0xf]
        %v253 = vld [vmem:[%s209 + $0x40] sm:$0xf]
        %v254 = vld [vmem:[%s209 + $0x44] sm:$0xf]
        %v255 = vld [vmem:[%s209 + $0x48] sm:$0xf]
        %v256 = vld [vmem:[%s209 + $0x4c] sm:$0xf]
        %v257 = vld [vmem:[%s209 + $0x50] sm:$0xf]
        %v258 = vld [vmem:[%s209 + $0x54] sm:$0xf]
        %v259 = vld [vmem:[%s209 + $0x58] sm:$0xf]
        %v260 = vld [vmem:[%s209 + $0x5c] sm:$0xf]
        %v261 = vld [vmem:[%s209 + $0x60] sm:$0xf]
        %v262 = vld [vmem:[%s209 + $0x64] sm:$0xf]
        %v263 = vld [vmem:[%s209 + $0x68] sm:$0xf]
        %v264 = vld [vmem:[%s209 + $0x6c] sm:$0xf]
        %v265 = vld [vmem:[%s209 + $0x70] sm:$0xf]
        %v266 = vld [vmem:[%s209 + $0x74] sm:$0xf]
        %v267 = vld [vmem:[%s209 + $0x78] sm:$0xf]
        %v268 = vld [vmem:[%s209 + $0x7c] sm:$0xf]
        %v269 = vld [vmem:[%s1] sm:$0xf]
        %v270 = vld [vmem:[%s1 + $0x4] sm:$0xf]
        %v271 = vld [vmem:[%s1 + $0x8] sm:$0xf]
        %v272 = vld [vmem:[%s1 + $0xc] sm:$0xf]
        %v273 = vld [vmem:[%s1 + $0x10] sm:$0xf]
        %v274 = vld [vmem:[%s1 + $0x14] sm:$0xf]
        %v275 = vld [vmem:[%s1 + $0x18] sm:$0xf]
        %v276 = vld [vmem:[%s1 + $0x1c] sm:$0xf]
        %v277 = vld [vmem:[%s1 + $0x20] sm:$0xf]
        %v278 = vld [vmem:[%s1 + $0x24] sm:$0xf]
        %v279 = vld [vmem:[%s1 + $0x28] sm:$0xf]
        %v280 = vld [vmem:[%s1 + $0x2c] sm:$0xf]
        %v281 = vld [vmem:[%s1 + $0x30] sm:$0xf]
        %v282 = vld [vmem:[%s1 + $0x34] sm:$0xf]
        %v283 = vld [vmem:[%s1 + $0x38] sm:$0xf]
        %v284 = vld [vmem:[%s1 + $0x3c] sm:$0xf]
        %v317 = vunpack.c.l.b16 %v237
        %v318 = vunpack.c.l.b16 %v238
        %v319 = vunpack.c.l.b16 %v239
        %v320 = vunpack.c.l.b16 %v240
        %v321 = vunpack.c.l.b16 %v241
        %v322 = vunpack.c.l.b16 %v242
        %v323 = vunpack.c.l.b16 %v243
        %v324 = vunpack.c.l.b16 %v244
        %v325 = vunpack.c.l.b16 %v245
        %v326 = vunpack.c.l.b16 %v246
        %v327 = vunpack.c.l.b16 %v247
        %v328 = vunpack.c.l.b16 %v248
        %v329 = vunpack.c.l.b16 %v249
        %v330 = vunpack.c.l.b16 %v250
        %v331 = vunpack.c.l.b16 %v251
        %v332 = vunpack.c.l.b16 %v252
        %v333 = vunpack.c.l.b16 %v253
        %v334 = vunpack.c.l.b16 %v254
        %v335 = vunpack.c.l.b16 %v255
        %v336 = vunpack.c.l.b16 %v256
        %v337 = vunpack.c.l.b16 %v257
        %v338 = vunpack.c.l.b16 %v258
        %v339 = vunpack.c.l.b16 %v259
        %v340 = vunpack.c.l.b16 %v260
        %v341 = vunpack.c.l.b16 %v261
        %v342 = vunpack.c.l.b16 %v262
        %v343 = vunpack.c.l.b16 %v263
        %v344 = vunpack.c.l.b16 %v264
        %v345 = vunpack.c.l.b16 %v265
        %v346 = vunpack.c.l.b16 %v266
        %v347 = vunpack.c.l.b16 %v267
        %v348 = vunpack.c.l.b16 %v268
        %v349 = vpack.c.b16 %v318, %v317
        %v350 = vpack.c.b16 %v320, %v319
        %v351 = vpack.c.b16 %v322, %v321
        %v352 = vpack.c.b16 %v324, %v323
        %v353 = vpack.c.b16 %v326, %v325
        %v354 = vpack.c.b16 %v328, %v327
        %v355 = vpack.c.b16 %v330, %v329
        %v356 = vpack.c.b16 %v332, %v331
        %v357 = vpack.c.b16 %v334, %v333
        %v358 = vpack.c.b16 %v336, %v335
        %v359 = vpack.c.b16 %v338, %v337
        %v360 = vpack.c.b16 %v340, %v339
        %v361 = vpack.c.b16 %v342, %v341
        %v362 = vpack.c.b16 %v344, %v343
        %v363 = vpack.c.b16 %v346, %v345
        %v364 = vpack.c.b16 %v348, %v347
        %v397 = vunpack.c.l.b16 %v269
        %v398 = vunpack.c.l.b16 %v270
        %v399 = vunpack.c.l.b16 %v271
        %v400 = vunpack.c.l.b16 %v272
        %v401 = vunpack.c.l.b16 %v273
        %v402 = vunpack.c.l.b16 %v274
        %v403 = vunpack.c.l.b16 %v275
        %v404 = vunpack.c.l.b16 %v276
        %v405 = vunpack.c.l.b16 %v277
        %v406 = vunpack.c.l.b16 %v278
        %v407 = vunpack.c.l.b16 %v279
        %v408 = vunpack.c.l.b16 %v280
        %v409 = vunpack.c.l.b16 %v281
        %v410 = vunpack.c.l.b16 %v282
        %v411 = vunpack.c.l.b16 %v283
        %v412 = vunpack.c.l.b16 %v284
        %v413 = vpack.c.b16 %v398, %v397
        %v414 = vpack.c.b16 %v400, %v399
        %v415 = vpack.c.b16 %v402, %v401
        %v416 = vpack.c.b16 %v404, %v403
        %v417 = vpack.c.b16 %v406, %v405
        %v418 = vpack.c.b16 %v408, %v407
        %v419 = vpack.c.b16 %v410, %v409
        %v420 = vpack.c.b16 %v412, %v411
        %429 = vmatprep.subr.bf16.mxu0 0
        %430 = vmatpush1.bf16.msra.mxu0 %v413
        %431 = vmatprep.subr.bf16.mxu0 0
        %432 = vmatpush1.bf16.msra.mxu0 %v414
        %433 = vmatprep.subr.bf16.mxu0 0
        %434 = vmatpush1.bf16.msra.mxu0 %v415
        %435 = vmatprep.subr.bf16.mxu0 0
        %436 = vmatpush1.bf16.msra.mxu0 %v416
        %437 = vmatprep.subr.bf16.mxu0 0
        %438 = vmatpush1.bf16.msra.mxu0 %v417
        %439 = vmatprep.subr.bf16.mxu0 0
        %440 = vmatpush1.bf16.msra.mxu0 %v418
        %441 = vmatprep.subr.bf16.mxu0 0
        %442 = vmatpush1.bf16.msra.mxu0 %v419
        %443 = vmatprep.subr.bf16.mxu0 0
        %444 = vmatpush1.bf16.msra.mxu0 %v420
        %445 = vmatprep.subr.bf16.mxu0 0
        %446 = vmatpush1.bf16.msra.mxu0 0
        %447 = vmatprep.subr.bf16.mxu0 0
        %448 = vmatpush1.bf16.msra.mxu0 0
        %449 = vmatprep.subr.bf16.mxu0 0
        %450 = vmatpush1.bf16.msra.mxu0 0
        %451 = vmatprep.subr.bf16.mxu0 0
        %452 = vmatpush1.bf16.msra.mxu0 0
        %453 = vmatprep.subr.bf16.mxu0 0
        %454 = vmatpush1.bf16.msra.mxu0 0
        %455 = vmatprep.subr.bf16.mxu0 0
        %456 = vmatpush1.bf16.msra.mxu0 0
        %457 = vmatprep.subr.bf16.mxu0 0
        %458 = vmatpush1.bf16.msra.mxu0 0
        %459 = vmatprep.subr.bf16.mxu0 0
        %460 = vmatpush1.bf16.msra.mxu0 0
        %461 = vmatprep.mubr.bf16.mxu0 0
        %462 = vmatmul.mubr.bf16.gmra.mrb[0].mxu0 %v349
        %v463 = vpop.f32.mrb[0].mxu0
        %v464 = vadd.f32 0.0, %v463
        %v465 = vpop.f32.mrb[0].mxu0
        %v466 = vpop.f32.mrb[0].mxu0
        %v467 = vadd.f32 0.0, %v466
        %v468 = vpop.f32.mrb[0].mxu0
        %469 = vmatprep.mubr.bf16.mxu0 0
        %470 = vmatmul.mubr.bf16.gmra.mrb[0].mxu0 %v350
        %v471 = vpop.f32.mrb[0].mxu0
        %v472 = vadd.f32 0.0, %v471
        %v473 = vpop.f32.mrb[0].mxu0
        %v474 = vpop.f32.mrb[0].mxu0
        %v475 = vadd.f32 0.0, %v474
        %v476 = vpop.f32.mrb[0].mxu0
        %477 = vmatprep.mubr.bf16.mxu0 0
        %478 = vmatmul.mubr.bf16.gmra.mrb[0].mxu0 %v351
        %v479 = vpop.f32.mrb[0].mxu0
        %v480 = vadd.f32 0.0, %v479
        %v481 = vpop.f32.mrb[0].mxu0
        %v482 = vpop.f32.mrb[0].mxu0
        %v483 = vadd.f32 0.0, %v482
        %v484 = vpop.f32.mrb[0].mxu0
        %485 = vmatprep.mubr.bf16.mxu0 0
        %486 = vmatmul.mubr.bf16.gmra.mrb[0].mxu0 %v352
        %v487 = vpop.f32.mrb[0].mxu0
        %v488 = vadd.f32 0.0, %v487
        %v489 = vpop.f32.mrb[0].mxu0
        %v490 = vpop.f32.mrb[0].mxu0
        %v491 = vadd.f32 0.0, %v490
        %v492 = vpop.f32.mrb[0].mxu0
        %493 = vmatprep.mubr.bf16.mxu0 0
        %494 = vmatmul.mubr.bf16.gmra.mrb[0].mxu0 %v353
        %v495 = vpop.f32.mrb[0].mxu0
        %v496 = vadd.f32 0.0, %v495
        %v497 = vpop.f32.mrb[0].mxu0
        %v498 = vpop.f32.mrb[0].mxu0
        %v499 = vadd.f32 0.0, %v498
        %v500 = vpop.f32.mrb[0].mxu0
        %501 = vmatprep.mubr.bf16.mxu0 0
        %502 = vmatmul.mubr.bf16.gmra.mrb[0].mxu0 %v354
        %v503 = vpop.f32.mrb[0].mxu0
        %v504 = vadd.f32 0.0, %v503
        %v505 = vpop.f32.mrb[0].mxu0
        %v506 = vpop.f32.mrb[0].mxu0
        %v507 = vadd.f32 0.0, %v506
        %v508 = vpop.f32.mrb[0].mxu0
        %509 = vmatprep.mubr.bf16.mxu0 0
        %510 = vmatmul.mubr.bf16.gmra.mrb[0].mxu0 %v355
        %v511 = vpop.f32.mrb[0].mxu0
        %v512 = vadd.f32 0.0, %v511
        %v513 = vpop.f32.mrb[0].mxu0
        %v514 = vpop.f32.mrb[0].mxu0
        %v515 = vadd.f32 0.0, %v514
        %v516 = vpop.f32.mrb[0].mxu0
        %517 = vmatprep.mubr.bf16.mxu0 0
        %518 = vmatmul.mubr.bf16.gmra.mrb[0].mxu0 %v356
        %v519 = vpop.f32.mrb[0].mxu0
        %v520 = vadd.f32 0.0, %v519
        %v521 = vpop.f32.mrb[0].mxu0
        %v522 = vpop.f32.mrb[0].mxu0
        %v523 = vadd.f32 0.0, %v522
        %v524 = vpop.f32.mrb[0].mxu0
        %525 = vmatprep.mubr.bf16.mxu0 0
        %526 = vmatmul.mubr.bf16.gmra.mrb[0].mxu0 %v357
        %v527 = vpop.f32.mrb[0].mxu0
        %v528 = vadd.f32 0.0, %v527
        %v529 = vpop.f32.mrb[0].mxu0
        %v530 = vpop.f32.mrb[0].mxu0
        %v531 = vadd.f32 0.0, %v530
        %v532 = vpop.f32.mrb[0].mxu0
        %533 = vmatprep.mubr.bf16.mxu0 0
        %534 = vmatmul.mubr.bf16.gmra.mrb[0].mxu0 %v358
        %v535 = vpop.f32.mrb[0].mxu0
        %v536 = vadd.f32 0.0, %v535
        %v537 = vpop.f32.mrb[0].mxu0
        %v538 = vpop.f32.mrb[0].mxu0
        %v539 = vadd.f32 0.0, %v538
        %v540 = vpop.f32.mrb[0].mxu0
        %541 = vmatprep.mubr.bf16.mxu0 0
        %542 = vmatmul.mubr.bf16.gmra.mrb[0].mxu0 %v359
        %v543 = vpop.f32.mrb[0].mxu0
        %v544 = vadd.f32 0.0, %v543
        %v545 = vpop.f32.mrb[0].mxu0
        %v546 = vpop.f32.mrb[0].mxu0
        %v547 = vadd.f32 0.0, %v546
        %v548 = vpop.f32.mrb[0].mxu0
        %549 = vmatprep.mubr.bf16.mxu0 0
        %550 = vmatmul.mubr.bf16.gmra.mrb[0].mxu0 %v360
        %v551 = vpop.f32.mrb[0].mxu0
        %v552 = vadd.f32 0.0, %v551
        %v553 = vpop.f32.mrb[0].mxu0
        %v554 = vpop.f32.mrb[0].mxu0
        %v555 = vadd.f32 0.0, %v554
        %v556 = vpop.f32.mrb[0].mxu0
        %557 = vmatprep.mubr.bf16.mxu0 0
        %558 = vmatmul.mubr.bf16.gmra.mrb[0].mxu0 %v361
        %v559 = vpop.f32.mrb[0].mxu0
        %v560 = vadd.f32 0.0, %v559
        %v561 = vpop.f32.mrb[0].mxu0
        %v562 = vpop.f32.mrb[0].mxu0
        %v563 = vadd.f32 0.0, %v562
        %v564 = vpop.f32.mrb[0].mxu0
        %565 = vmatprep.mubr.bf16.mxu0 0
        %566 = vmatmul.mubr.bf16.gmra.mrb[0].mxu0 %v362
        %v567 = vpop.f32.mrb[0].mxu0
        %v568 = vadd.f32 0.0, %v567
        %v569 = vpop.f32.mrb[0].mxu0
        %v570 = vpop.f32.mrb[0].mxu0
        %v571 = vadd.f32 0.0, %v570
        %v572 = vpop.f32.mrb[0].mxu0
        %573 = vmatprep.mubr.bf16.mxu0 0
        %574 = vmatmul.mubr.bf16.gmra.mrb[0].mxu0 %v363
        %v575 = vpop.f32.mrb[0].mxu0
        %v576 = vadd.f32 0.0, %v575
        %v577 = vpop.f32.mrb[0].mxu0
        %v578 = vpop.f32.mrb[0].mxu0
        %v579 = vadd.f32 0.0, %v578
        %v580 = vpop.f32.mrb[0].mxu0
        %581 = vmatprep.mubr.bf16.mxu0 0
        %582 = vmatmul.mubr.bf16.gmra.mrb[0].mxu0 %v364
        %v583 = vpop.f32.mrb[0].mxu0
        %v584 = vadd.f32 0.0, %v583
        %v585 = vpop.f32.mrb[0].mxu0
        %v586 = vpop.f32.mrb[0].mxu0
        %v587 = vadd.f32 0.0, %v586
        %v588 = vpop.f32.mrb[0].mxu0
        %589 = vdwg.mxu0
        %v590 = vld [vmem:[%s2] sm:$0x1]
        %v592 = vlaneseq
        %v593 = vshrl.u32 %v592, 7
        %v594 = vsub.s32 0, %v593
        %v595 = vrot.slane %v590, %v594
        %v597 = vmul.f32 %v464, %v595
        %v598 = vmul.f32 %v467, %v595
        %v599 = vmul.f32 %v472, %v595
        %v600 = vmul.f32 %v475, %v595
        %v601 = vmul.f32 %v480, %v595
        %v602 = vmul.f32 %v483, %v595
        %v603 = vmul.f32 %v488, %v595
        %v604 = vmul.f32 %v491, %v595
        %v605 = vmul.f32 %v496, %v595
        %v606 = vmul.f32 %v499, %v595
        %v607 = vmul.f32 %v504, %v595
        %v608 = vmul.f32 %v507, %v595
        %v609 = vmul.f32 %v512, %v595
        %v610 = vmul.f32 %v515, %v595
        %v611 = vmul.f32 %v520, %v595
        %v612 = vmul.f32 %v523, %v595
        %v613 = vmul.f32 %v528, %v595
        %v614 = vmul.f32 %v531, %v595
        %v615 = vmul.f32 %v536, %v595
        %v616 = vmul.f32 %v539, %v595
        %v617 = vmul.f32 %v544, %v595
        %v618 = vmul.f32 %v547, %v595
        %v619 = vmul.f32 %v552, %v595
        %v620 = vmul.f32 %v555, %v595
        %v621 = vmul.f32 %v560, %v595
        %v622 = vmul.f32 %v563, %v595
        %v623 = vmul.f32 %v568, %v595
        %v624 = vmul.f32 %v571, %v595
        %v625 = vmul.f32 %v576, %v595
        %v626 = vmul.f32 %v579, %v595
        %v627 = vmul.f32 %v584, %v595
        %v628 = vmul.f32 %v587, %v595
        %v629 = vld [vmem:[%s3] sm:$0x1]
        %v631 = vlaneseq
        %v632 = vshrl.u32 %v631, 7
        %v633 = vsub.s32 0, %v632
        %v634 = vrot.slane %v629, %v633
        %v636 = vadd.f32 %v597, %v634
        %v637 = vadd.f32 %v598, %v634
        %v638 = vadd.f32 %v599, %v634
        %v639 = vadd.f32 %v600, %v634
        %v640 = vadd.f32 %v601, %v634
        %v641 = vadd.f32 %v602, %v634
        %v642 = vadd.f32 %v603, %v634
        %v643 = vadd.f32 %v604, %v634
        %v644 = vadd.f32 %v605, %v634
        %v645 = vadd.f32 %v606, %v634
        %v646 = vadd.f32 %v607, %v634
        %v647 = vadd.f32 %v608, %v634
        %v648 = vadd.f32 %v609, %v634
        %v649 = vadd.f32 %v610, %v634
        %v650 = vadd.f32 %v611, %v634
        %v651 = vadd.f32 %v612, %v634
        %v652 = vadd.f32 %v613, %v634
        %v653 = vadd.f32 %v614, %v634
        %v654 = vadd.f32 %v615, %v634
        %v655 = vadd.f32 %v616, %v634
        %v656 = vadd.f32 %v617, %v634
        %v657 = vadd.f32 %v618, %v634
        %v658 = vadd.f32 %v619, %v634
        %v659 = vadd.f32 %v620, %v634
        %v660 = vadd.f32 %v621, %v634
        %v661 = vadd.f32 %v622, %v634
        %v662 = vadd.f32 %v623, %v634
        %v663 = vadd.f32 %v624, %v634
        %v664 = vadd.f32 %v625, %v634
        %v665 = vadd.f32 %v626, %v634
        %v666 = vadd.f32 %v627, %v634
        %v667 = vadd.f32 %v628, %v634
        %v668 = vmax.f32 %v636, 0.0
        %v669 = vmax.f32 %v637, 0.0
        %v670 = vmax.f32 %v638, 0.0
        %v671 = vmax.f32 %v639, 0.0
        %v672 = vmax.f32 %v640, 0.0
        %v673 = vmax.f32 %v641, 0.0
        %v674 = vmax.f32 %v642, 0.0
        %v675 = vmax.f32 %v643, 0.0
        %v676 = vmax.f32 %v644, 0.0
        %v677 = vmax.f32 %v645, 0.0
        %v678 = vmax.f32 %v646, 0.0
        %v679 = vmax.f32 %v647, 0.0
        %v680 = vmax.f32 %v648, 0.0
        %v681 = vmax.f32 %v649, 0.0
        %v682 = vmax.f32 %v650, 0.0
        %v683 = vmax.f32 %v651, 0.0
        %v684 = vmax.f32 %v652, 0.0
        %v685 = vmax.f32 %v653, 0.0
        %v686 = vmax.f32 %v654, 0.0
        %v687 = vmax.f32 %v655, 0.0
        %v688 = vmax.f32 %v656, 0.0
        %v689 = vmax.f32 %v657, 0.0
        %v690 = vmax.f32 %v658, 0.0
        %v691 = vmax.f32 %v659, 0.0
        %v692 = vmax.f32 %v660, 0.0
        %v693 = vmax.f32 %v661, 0.0
        %v694 = vmax.f32 %v662, 0.0
        %v695 = vmax.f32 %v663, 0.0
        %v696 = vmax.f32 %v664, 0.0
        %v697 = vmax.f32 %v665, 0.0
        %v698 = vmax.f32 %v666, 0.0
        %v699 = vmax.f32 %v667, 0.0
        %v700 = vadd.f32 %v668, %v669
        %v701 = vadd.f32 %v672, %v673
        %v702 = vadd.f32 %v676, %v677
        %v703 = vadd.f32 %v680, %v681
        %v704 = vadd.f32 %v684, %v685
        %v705 = vadd.f32 %v688, %v689
        %v706 = vadd.f32 %v692, %v693
        %v707 = vadd.f32 %v696, %v697
        %v708 = vadd.f32 %v670, %v671
        %v709 = vadd.f32 %v674, %v675
        %v710 = vadd.f32 %v678, %v679
        %v711 = vadd.f32 %v682, %v683
        %v712 = vadd.f32 %v686, %v687
        %v713 = vadd.f32 %v690, %v691
        %v714 = vadd.f32 %v694, %v695
        %v715 = vadd.f32 %v698, %v699
        %v716 = vadd.f32 %v700, %v708
        %v717 = vadd.f32 %v701, %v709
        %v718 = vadd.f32 %v702, %v710
        %v719 = vadd.f32 %v703, %v711
        %v720 = vadd.f32 %v704, %v712
        %v721 = vadd.f32 %v705, %v713
        %v722 = vadd.f32 %v706, %v714
        %v723 = vadd.f32 %v707, %v715
        %vm724 = vcmask 64512
        %725 = vst.msk [vmem:[%s233] sm:$0xff] %vm724, %v716
        %726 = vst.msk [vmem:[%s233 + $0x8] sm:$0xff] %vm724, %v717
        %727 = vst.msk [vmem:[%s233 + $0x10] sm:$0xff] %vm724, %v718
        %728 = vst.msk [vmem:[%s233 + $0x18] sm:$0xff] %vm724, %v719
        %729 = vst.msk [vmem:[%s233 + $0x20] sm:$0xff] %vm724, %v720
        %730 = vst.msk [vmem:[%s233 + $0x28] sm:$0xff] %vm724, %v721
        %731 = vst.msk [vmem:[%s233 + $0x30] sm:$0xff] %vm724, %v722
        %732 = vst.msk [vmem:[%s233 + $0x38] sm:$0xff] %vm724, %v723
        %s733 = sand.u32 %s134, 1
        %s734 = scalar_lea.sflag [#allocation4], %s733
        %s735 = sand.u32 %s134, 1
        %s736 = smul.addr %s735, 64
        %s737 = scalar_lea.vmem [#allocation5], %s736
        // Predicated region
        $region41: #{tpu_custom_call.1} parent=35 // pred_check
          %p738 = pneg %p144
        $region42: #{tpu_custom_call.1} parent=35 // pred_check_branch
          %740 = sbr.rel (%p738) target = $region44
        $region43: #{tpu_custom_call.1} parent=35 // pred_region
          %s741 = smul.u32 8, %s26
          %s743 = ssub.s32 1024, 1024
          %744 = vsyncadd %s734, %s743
          %s745 = smul.addr %s25, 8
          %s746 = sadd.s32 %s741, %s745
          %s747 = smul.addr %s746, 128
          %s748 = scalar_lea.hbm %s4, %s747
          %s749 = sshll.u32 %s737, 4
          %s750 = int_to_ptr.vmem [resolvable:$true] %s749
          %755 = dma.vmem_to_hbm [thread:$0]  %s750, 1024, %s748, %s734, 128, 128, 8
        $region44: #{tpu_custom_call.1} parent=35 // pred_fallthru
          _
      $region36: #{tpu_custom_call.1} parent=5 // pred_fallthru
        _
      %p756 = scmp.le.s32.totalorder 2, %s16
      // Predicated region
      $region45: #{tpu_custom_call.1} parent=5 // pred_check
        %p757 = pneg %p756
      $region46: #{tpu_custom_call.1} parent=5 // pred_check_branch
        %759 = sbr.rel (%p757) target = $region48
      $region47: #{tpu_custom_call.1} parent=5 // pred_region
        %s760 = ssub.s32 %s16, 2
        // Predicated region
        $region49: #{tpu_custom_call.1} parent=47 // pred_check
          %p761 = pneg %p150
        $region50: #{tpu_custom_call.1} parent=47 // pred_check_branch
          %763 = sbr.rel (%p761) target = $region52
        $region51: #{tpu_custom_call.1} parent=47 // pred_region
          %s764 = sand.u32 %s135, 1
          %s765 = scalar_lea.sflag [#allocation4], %s764
          %s766 = sand.u32 %s135, 1
          %s767 = smul.addr %s766, 64
          %s768 = scalar_lea.vmem [#allocation5], %s767
          %769 = dma.done %s765, 1024
        $region52: #{tpu_custom_call.1} parent=47 // pred_fallthru
          _
      $region48: #{tpu_custom_call.1} parent=5 // pred_fallthru
        _
    $region6: #{tpu_custom_call.1} parent=1 // loop_footer
      %s20 = sadd.s32 1, %s16
    $region7: #{tpu_custom_call.1} parent=1 // loop_footer_branch
      %15 = sbr.rel target = $region3
    $region8: #{tpu_custom_call.1} parent=1 // loop_exit
      _
    %770 = vsyncpa [#allocation3], 1
    %s771 = scalar_lea.sflag [#allocation3], 1
    %772 = vsyncpa %s771, 1
    %773 = vsyncpa [#allocation4], 1
    %s774 = scalar_lea.sflag [#allocation4], 1
    %775 = vsyncpa %s774, 1

</llo_original>
